<compile_context>
chip_gen: v5e
topology: v5e:2x2
jax: 0.10.0
libtpu: 0.0.40
codegen_flags: <defaults>
</compile_context>

<pallas_src>
import functools

import jax
import jax.numpy as jnp
import numpy as np
from jax import lax
from jax.experimental import pallas as pl
from jax.experimental.pallas import tpu as pltpu


def _ls_nll_kernel(targets_ref, logits_ref, nll_out_ref, w_out_ref, *,
                   label_smoothing, ignore_index, num_classes, seq_len, seq_tile):
    s = pl.program_id(1)

    x = logits_ref[0].astype(jnp.float32)    # (tS, C), cast per-block; reductions in f32
    t = targets_ref[0]                       # (tS, 1) int32

    # log-softmax building blocks (row-wise over the class/lane axis).
    m = jnp.max(x, axis=-1, keepdims=True)                               # (tS, 1)
    lse = jnp.log(jnp.sum(jnp.exp(x - m), axis=-1, keepdims=True))       # (tS, 1)
    mlse = m + lse                                                       # (tS, 1)

    # Fused weighted reduction over classes:
    #   nll = -(sum_c w_c * log p_c) = mlse - sum_c w_c * x_c
    # with w_c = eps/C + (1-eps) * [c == target]   (sum_c w_c == 1).
    eps = label_smoothing
    smooth = eps / num_classes
    classes = lax.broadcasted_iota(jnp.int32, x.shape, 1)                # (tS, C)
    w_c = jnp.where(classes == t, 1.0 - eps + smooth, smooth)            # (tS, C)
    weighted = jnp.sum(x * w_c, axis=-1, keepdims=True)                  # (tS, 1)
    nll = mlse - weighted                                                # (tS, 1)

    # Validity mask: in-bounds rows (cdiv tail) AND not ignore_index.
    row_ids = lax.broadcasted_iota(jnp.int32, t.shape, 0)                # (tS, 1)
    in_bounds = (s * seq_tile + row_ids) < seq_len
    if ignore_index is not None:
        valid = jnp.logical_and(in_bounds, t != ignore_index)
    else:
        valid = in_bounds
    w = jnp.where(valid, 1.0, 0.0)
    nll = jnp.where(valid, nll, 0.0)

    nll_sum = jnp.sum(nll, axis=0, keepdims=True)                        # (1, 1)
    w_sum = jnp.sum(w, axis=0, keepdims=True)                            # (1, 1)

    # Lane-dense (1, 1, 128) partial outputs (unmasked vector stores).
    nll_out_ref[...] = jnp.broadcast_to(nll_sum.reshape(1, 1, 1), nll_out_ref.shape)
    w_out_ref[...] = jnp.broadcast_to(w_sum.reshape(1, 1, 1), w_out_ref.shape)


def _choose_seq_tile(S, C, itemsize, target_bytes=2 * 1024 * 1024, max_tile=512):
    """Fixed, sublane-aligned sequence tile (independent of S's divisors).

    The logits block (tS, C) stays under ~target_bytes so that the double-buffered
    input plus the in-kernel f32 temporaries fit comfortably inside every
    generation's VMEM (incl. v7x's 64 MiB physical / v5e's 16 MiB scoped default).
    If S itself is small, the full dimension is used (always a legal block shape).
    """
    sublane = 8 * max(1, 4 // max(1, itemsize))   # 8 for f32, 16 for bf16, ...
    budget_rows = max(1, target_bytes // max(1, C * itemsize))
    tile = min(max_tile, budget_rows)
    tile = max(sublane, (tile // sublane) * sublane)   # sublane-aligned, >= sublane
    if S <= tile:
        return S                                       # full dim: always legal
    return tile


def label_smoothing_nll_loss(logits, targets, *, label_smoothing,
                             ignore_index=-100, should_reduce=True,
                             reduction="mean", seq_tile=None):
    """Pallas implementation of LabelSmoothingNLLLoss.forward."""
    B, S, C = logits.shape
    targets3 = targets.astype(jnp.int32).reshape(B, S, 1)

    ts = seq_tile if seq_tile is not None else _choose_seq_tile(
        S, C, jnp.dtype(logits.dtype).itemsize)
    num_s_tiles = pl.cdiv(S, ts)
    grid = (B, num_s_tiles)

    kernel = functools.partial(
        _ls_nll_kernel,
        label_smoothing=float(label_smoothing),
        ignore_index=ignore_index,
        num_classes=C,
        seq_len=S,
        seq_tile=ts,
    )

    nll_part, w_part = pl.pallas_call(
        kernel,
        out_shape=(jax.ShapeDtypeStruct((B, num_s_tiles, 128), jnp.float32),
                   jax.ShapeDtypeStruct((B, num_s_tiles, 128), jnp.float32)),
        grid=grid,
        in_specs=[
            pl.BlockSpec((1, ts, 1), lambda b, s: (b, s, 0)),   # targets
            pl.BlockSpec((1, ts, C), lambda b, s: (b, s, 0)),   # logits (native dtype)
        ],
        out_specs=(
            pl.BlockSpec((1, 1, 128), lambda b, s: (b, s, 0)),  # partial nll sums
            pl.BlockSpec((1, 1, 128), lambda b, s: (b, s, 0)),  # partial weight sums
        ),
        compiler_params=pltpu.CompilerParams(
            dimension_semantics=("parallel", "parallel"),
            vmem_limit_bytes=48 * 1024 * 1024),
    )(targets3, logits)

    # Tiny JAX epilogue: reduce the per-(b, s-tile) partials.
    # NOTE: if every position of a batch row is ignore_index this divides by zero
    # (inf/NaN), matching the PyTorch reference behavior.
    nll_per_batch = jnp.sum(nll_part[:, :, 0], axis=1)          # (B,)
    w_per_batch = jnp.sum(w_part[:, :, 0], axis=1)              # (B,)
    per_batch = nll_per_batch / w_per_batch                     # (B,)

    if not should_reduce:
        return per_batch
    if reduction == "sum":
        return jnp.sum(per_batch)
    return jnp.mean(per_batch)                                  # default / 'mean'


def _reference(logits, targets, *, label_smoothing, ignore_index=-100,
               should_reduce=True, reduction="mean"):
    """Pure-JAX port of the PyTorch forward for verification."""
    ignore_mask = targets == ignore_index
    weights = jnp.where(ignore_mask, 0.0, 1.0)
    non_batch = tuple(range(1, targets.ndim))
    wsum = weights.sum(axis=non_batch)
    C = logits.shape[-1]
    logp = jax.nn.log_softmax(logits.astype(jnp.float32), axis=-1)
    one_hot = jax.nn.one_hot(targets, C, dtype=jnp.float32) * (1.0 - label_smoothing)
    smoothed = one_hot + label_smoothing / C
    nll = -(logp * smoothed).sum(-1)
    nll = jnp.where(ignore_mask, 0.0, nll)
    per_batch = nll.sum(axis=non_batch) / wsum
    if not should_reduce:
        return per_batch
    return per_batch.mean() if reduction == "mean" else per_batch.sum()


if __name__ == "__main__":
    key = jax.random.PRNGKey(0)
    B, S, C = 2, 8, 32
    k1, k2 = jax.random.split(key)
    logits = jax.random.normal(k1, (B, S, C), dtype=jnp.float32)
    targets = jax.random.randint(k2, (B, S), 0, C, dtype=jnp.int32)
    # Sprinkle in some ignored positions (ignore_index = -100).
    targets = targets.at[0, 0].set(-100).at[1, 5].set(-100)

    label_smoothing = 0.1

    loss = label_smoothing_nll_loss(
        logits, targets, label_smoothing=label_smoothing,
        ignore_index=-100, should_reduce=True, reduction="mean")
    loss = jax.block_until_ready(loss)
    ref = _reference(
        logits, targets, label_smoothing=label_smoothing,
        ignore_index=-100, should_reduce=True, reduction="mean")
    np.testing.assert_allclose(np.asarray(loss), np.asarray(ref),
                               rtol=1e-5, atol=1e-5)

    # Unreduced (per-batch) path and 'sum' reduction.
    per_batch = label_smoothing_nll_loss(
        logits, targets, label_smoothing=label_smoothing,
        ignore_index=-100, should_reduce=False)
    per_batch = jax.block_until_ready(per_batch)
    ref_pb = _reference(
        logits, targets, label_smoothing=label_smoothing,
        ignore_index=-100, should_reduce=False)
    np.testing.assert_allclose(np.asarray(per_batch), np.asarray(ref_pb),
                               rtol=1e-5, atol=1e-5)

    loss_sum = label_smoothing_nll_loss(
        logits, targets, label_smoothing=label_smoothing,
        ignore_index=-100, should_reduce=True, reduction="sum")
    loss_sum = jax.block_until_ready(loss_sum)
    ref_sum = _reference(
        logits, targets, label_smoothing=label_smoothing,
        ignore_index=-100, should_reduce=True, reduction="sum")
    np.testing.assert_allclose(np.asarray(loss_sum), np.asarray(ref_sum),
                               rtol=1e-5, atol=1e-5)

    # Exercise the cdiv / tail-masking path (S not a multiple of the forced tile).
    B2, S2, C2 = 2, 20, 32
    k3, k4 = jax.random.split(jax.random.PRNGKey(0), 2)
    logits2 = jax.random.normal(k3, (B2, S2, C2), dtype=jnp.float32)
    targets2 = jax.random.randint(k4, (B2, S2), 0, C2, dtype=jnp.int32)
    targets2 = targets2.at[0, 3].set(-100)
    loss2 = label_smoothing_nll_loss(
        logits2, targets2, label_smoothing=label_smoothing,
        ignore_index=-100, should_reduce=True, reduction="mean", seq_tile=8)
    loss2 = jax.block_until_ready(loss2)
    ref2 = _reference(
        logits2, targets2, label_smoothing=label_smoothing,
        ignore_index=-100, should_reduce=True, reduction="mean")
    np.testing.assert_allclose(np.asarray(loss2), np.asarray(ref2),
                               rtol=1e-5, atol=1e-5)

    print("KERNEL_OK")
</pallas_src>

<mosaic_0001>
module attributes {stable_mosaic.version = 11 : i64} {
  func.func @_ls_nll_kernel(%arg0: i32, %arg1: i32, %arg2: memref<1x8x1xi32, #tpu.memory_space<vmem>>, %arg3: memref<1x8x32xf32, #tpu.memory_space<vmem>>, %arg4: memref<1x1x128xf32, #tpu.memory_space<vmem>>, %arg5: memref<1x1x128xf32, #tpu.memory_space<vmem>>) attributes {dimension_semantics = [#tpu.dimension_semantics<parallel>, #tpu.dimension_semantics<parallel>], iteration_bounds = array<i64: 2, 1>, scalar_prefetch = 0 : i64, scratch_operands = 0 : i64, tpu.core_type = #tpu.core_type<tc>, window_params = [{transform_indices = @transform_0, window_bounds = array<i64: 1, 8, 1>}, {transform_indices = @transform_1, window_bounds = array<i64: 1, 8, 32>}, {transform_indices = @transform_2, window_bounds = array<i64: 1, 1, 128>}, {transform_indices = @transform_3, window_bounds = array<i64: 1, 1, 128>}]} {
    %c0 = arith.constant 0 : index
    %c0_0 = arith.constant 0 : index
    %c0_1 = arith.constant 0 : index
    %0 = vector.load %arg3[%c0, %c0_0, %c0_1] : memref<1x8x32xf32, #tpu.memory_space<vmem>>, vector<1x8x32xf32>
    %1 = vector.shape_cast %0 : vector<1x8x32xf32> to vector<8x32xf32>
    %c0_2 = arith.constant 0 : index
    %c0_3 = arith.constant 0 : index
    %c0_4 = arith.constant 0 : index
    %2 = vector.load %arg2[%c0_2, %c0_3, %c0_4] : memref<1x8x1xi32, #tpu.memory_space<vmem>>, vector<1x8x1xi32>
    %3 = vector.shape_cast %2 : vector<1x8x1xi32> to vector<8x1xi32>
    %cst = arith.constant dense<0xFF800000> : vector<8xf32>
    %4 = vector.multi_reduction <maximumf>, %1, %cst [1] : vector<8x32xf32> to vector<8xf32>
    %5 = vector.shape_cast %4 : vector<8xf32> to vector<8x1xf32>
    %6 = vector.broadcast %5 : vector<8x1xf32> to vector<8x32xf32>
    %7 = arith.subf %1, %6 : vector<8x32xf32>
    %8 = math.exp %7 : vector<8x32xf32>
    %cst_5 = arith.constant dense<0.000000e+00> : vector<8xf32>
    %9 = vector.multi_reduction <add>, %8, %cst_5 [1] : vector<8x32xf32> to vector<8xf32>
    %10 = vector.shape_cast %9 : vector<8xf32> to vector<8x1xf32>
    %11 = math.log %10 : vector<8x1xf32>
    %12 = arith.addf %5, %11 : vector<8x1xf32>
    %13 = tpu.iota {dimensions = array<i32: 1>} : vector<8x32xi32>
    %14 = vector.broadcast %3 : vector<8x1xi32> to vector<8x32xi32>
    %15 = arith.cmpi eq, %13, %14 : vector<8x32xi32>
    %cst_6 = arith.constant 0.903124988 : f32
    %cst_7 = arith.constant 3.125000e-03 : f32
    %16 = vector.broadcast %cst_6 : f32 to vector<8x32xf32>
    %17 = vector.broadcast %cst_7 : f32 to vector<8x32xf32>
    %18 = arith.select %15, %16, %17 : vector<8x32xi1>, vector<8x32xf32>
    %19 = arith.mulf %1, %18 : vector<8x32xf32>
    %cst_8 = arith.constant dense<0.000000e+00> : vector<8xf32>
    %20 = vector.multi_reduction <add>, %19, %cst_8 [1] : vector<8x32xf32> to vector<8xf32>
    %21 = vector.shape_cast %20 : vector<8xf32> to vector<8x1xf32>
    %22 = arith.subf %12, %21 : vector<8x1xf32>
    %23 = tpu.iota {dimensions = array<i32: 0>} : vector<8x1xi32>
    %c8_i32 = arith.constant 8 : i32
    %24 = arith.muli %arg1, %c8_i32 : i32
    %25 = vector.broadcast %24 : i32 to vector<8x1xi32>
    %26 = arith.addi %25, %23 : vector<8x1xi32>
    %c8_i32_9 = arith.constant 8 : i32
    %27 = vector.broadcast %c8_i32_9 : i32 to vector<8x1xi32>
    %28 = arith.cmpi slt, %26, %27 : vector<8x1xi32>
    %c-100_i32 = arith.constant -100 : i32
    %29 = vector.broadcast %c-100_i32 : i32 to vector<8x1xi32>
    %30 = arith.cmpi ne, %3, %29 : vector<8x1xi32>
    %31 = arith.andi %28, %30 : vector<8x1xi1>
    %cst_10 = arith.constant 1.000000e+00 : f32
    %cst_11 = arith.constant 0.000000e+00 : f32
    %32 = vector.broadcast %cst_10 : f32 to vector<8x1xf32>
    %33 = vector.broadcast %cst_11 : f32 to vector<8x1xf32>
    %34 = arith.select %31, %32, %33 : vector<8x1xi1>, vector<8x1xf32>
    %cst_12 = arith.constant 0.000000e+00 : f32
    %35 = vector.broadcast %cst_12 : f32 to vector<8x1xf32>
    %36 = arith.select %31, %22, %35 : vector<8x1xi1>, vector<8x1xf32>
    %cst_13 = arith.constant dense<0.000000e+00> : vector<1xf32>
    %37 = vector.multi_reduction <add>, %36, %cst_13 [0] : vector<8x1xf32> to vector<1xf32>
    %38 = vector.shape_cast %37 : vector<1xf32> to vector<1x1xf32>
    %cst_14 = arith.constant dense<0.000000e+00> : vector<1xf32>
    %39 = vector.multi_reduction <add>, %34, %cst_14 [0] : vector<8x1xf32> to vector<1xf32>
    %40 = vector.shape_cast %39 : vector<1xf32> to vector<1x1xf32>
    %41 = vector.shape_cast %38 : vector<1x1xf32> to vector<1x1x1xf32>
    %42 = vector.shape_cast %41 : vector<1x1x1xf32> to vector<1x1x1xf32>
    %43 = vector.broadcast %42 : vector<1x1x1xf32> to vector<1x1x128xf32>
    %c0_15 = arith.constant 0 : index
    %c0_16 = arith.constant 0 : index
    %c0_17 = arith.constant 0 : index
    %44 = vector.load %arg4[%c0_15, %c0_16, %c0_17] : memref<1x1x128xf32, #tpu.memory_space<vmem>>, vector<1x1x128xf32>
    tpu.vector_store %arg4[%c0_15, %c0_16, %c0_17], %43 {strides = array<i32>} : memref<1x1x128xf32, #tpu.memory_space<vmem>>, vector<1x1x128xf32>,
    %45 = vector.shape_cast %40 : vector<1x1xf32> to vector<1x1x1xf32>
    %46 = vector.shape_cast %45 : vector<1x1x1xf32> to vector<1x1x1xf32>
    %47 = vector.broadcast %46 : vector<1x1x1xf32> to vector<1x1x128xf32>
    %c0_18 = arith.constant 0 : index
    %c0_19 = arith.constant 0 : index
    %c0_20 = arith.constant 0 : index
    %48 = vector.load %arg5[%c0_18, %c0_19, %c0_20] : memref<1x1x128xf32, #tpu.memory_space<vmem>>, vector<1x1x128xf32>
    tpu.vector_store %arg5[%c0_18, %c0_19, %c0_20], %47 {strides = array<i32>} : memref<1x1x128xf32, #tpu.memory_space<vmem>>, vector<1x1x128xf32>,
    return
  }
  func.func @transform_0(%arg0: i32, %arg1: i32) -> (i32, i32, i32) {
    %c0_i32 = arith.constant 0 : i32
    %c0_i32_0 = arith.constant 0 : i32
    return %arg0, %arg1, %c0_i32 : i32, i32, i32
  }
  func.func @transform_1(%arg0: i32, %arg1: i32) -> (i32, i32, i32) {
    %c0_i32 = arith.constant 0 : i32
    %c0_i32_0 = arith.constant 0 : i32
    return %arg0, %arg1, %c0_i32 : i32, i32, i32
  }
  func.func @transform_2(%arg0: i32, %arg1: i32) -> (i32, i32, i32) {
    %c0_i32 = arith.constant 0 : i32
    %c0_i32_0 = arith.constant 0 : i32
    return %arg0, %arg1, %c0_i32 : i32, i32, i32
  }
  func.func @transform_3(%arg0: i32, %arg1: i32) -> (i32, i32, i32) {
    %c0_i32 = arith.constant 0 : i32
    %c0_i32_0 = arith.constant 0 : i32
    return %arg0, %arg1, %c0_i32 : i32, i32, i32
  }
}

</mosaic_0001>

<llo_original>
// kernel: tpu_custom_call.1
$region0: #{tpu_custom_call.1}
  #allocation0 [shape = 'u32[]', space=smem, size = 0x4, offset = 0x4, fixed_abs, tag = 'smem constant byte address 0x4 - core index']
  #allocation1 [shape = 'u32[72,128]{1,0:T(1,128)}', space=vmem, size = 0x9000, scoped, tag = 'internal scratch']
  %s0 = inlined_call_operand.vmem [shape: s32[2,8,1], index: 0, kind: input, shape index: {}]
  %s1 = inlined_call_operand.vmem [shape: f32[2,8,32], index: 1, kind: input, shape index: {}]
  %s2 = inlined_call_operand.hbm [shape: f32[2,1,128], index: 2, kind: output, shape index: {0}]
  %s3 = inlined_call_operand.hbm [shape: f32[2,1,128], index: 3, kind: output, shape index: {1}]
  %4 = xla_tuple %s2, %s3
  %s5 = sld [smem:[#allocation0]]
  $region49: #{tpu_custom_call.1} parent=0
    _
  %s7 = ssub.s32 1, %s5
  %s8 = scalar_select 0, %s7, %s5
  $region1: #{tpu_custom_call.1} parent=0
    #allocation2 [shape = 'u8[1024]{0}', space=vmem, size = 0x400, scoped, tag = 'output window, operand 0']
    #allocation3 [shape = 's32[2]{0}', space=sflag, size = 0x8, scoped, tag = 'scoped memory for tpu_custom_call.1']
    #allocation4 [shape = 'u8[1024]{0}', space=vmem, size = 0x400, scoped, tag = 'output window, operand 1']
    #allocation5 [shape = 's32[2]{0}', space=sflag, size = 0x8, scoped, tag = 'scoped memory for tpu_custom_call.1']
    %9 = vsyncpa [#allocation3], 0
    %s10 = scalar_lea.sflag [#allocation3], 1
    %11 = vsyncpa %s10, 0
    %12 = vsyncpa [#allocation5], 0
    %s13 = scalar_lea.sflag [#allocation5], 1
    %14 = vsyncpa %s13, 0
    loop: start=0, step=1, limit=4
    $region2: #{tpu_custom_call.1} parent=1 // loop_pre_header
      _
    $region3: #{tpu_custom_call.1} parent=1 // loop_header
      %s16 = sphi 0, %s20
      %p17 = scmp.ge.s32.totalorder %s16, 4
      %s23 = sphi 0, %s35
      %s24 = sphi 0, %s31
      %s25 = sphi 0, %s23
      %s26 = sphi 0, %s24
      %s27 = sphi 0, %s25
      %s28 = sphi 0, %s26
      %s40 = sphi 0, %s42
      %s43 = sphi 0, %s40
      %s44 = sphi 0, %s43
      %s60 = sphi 0, %s44
      %s68 = sphi 0, %s70
      %s71 = sphi 0, %s68
      %s72 = sphi 0, %s71
      %s88 = sphi 0, %s72
      %s96 = sphi 0, %s98
      %s99 = sphi 0, %s96
      %s100 = sphi 0, %s99
      %s116 = sphi 0, %s100
      %s124 = sphi 0, %s126
      %s127 = sphi 0, %s124
      %s128 = sphi 0, %s127
      %s144 = sphi 0, %s128
    $region4: #{tpu_custom_call.1} parent=1 // loop_header_branch
      %19 = sbr.rel (%p17) target = $region8
    $region5: #{tpu_custom_call.1} parent=1 // loop_body
      %s21 = ssub.s32 %s16, 1
      %s22 = ssub.s32 %s16, 2
      %s29 = sadd.s32 1, %s24
      %p30 = scmp.ge.s32.totalorder %s29, 1
      %s31 = scalar_select %p30, 0, %s29
      %s32 = sadd.s32 1, %s23
      %s33 = scalar_select %p30, %s32, %s23
      %p34 = scmp.ge.s32.totalorder %s33, 2
      %s35 = scalar_select %p34, 0, %s33
      %s36 = ssub.s32 %s23, %s35
      %s37 = ssub.s32 %s24, %s31
      %s38 = sor.u32 %s36, %s37
      %p39 = scmp.eq.s32.totalorder %s38, 0
      %s41 = sadd.s32 %s40, 1
      %s42 = scalar_select %p39, %s40, %s41
      %p45 = pneg %p39
      %p46 = scmp.eq.s32.totalorder %s16, 1
      %p47 = por %p45, %p46
      %p48 = scmp.ne.s32.totalorder %s40, %s43
      %p49 = scmp.eq.s32.totalorder %s16, 0
      %p50 = por %p48, %p49
      %p51 = scmp.ne.s32.totalorder %s40, %s43
      %p52 = scmp.eq.s32.totalorder %s21, 1
      %p53 = por %p51, %p52
      %p54 = scmp.ne.s32.totalorder %s43, %s44
      %p55 = scmp.eq.s32.totalorder %s21, 0
      %p56 = por %p54, %p55
      %p57 = scmp.ne.s32.totalorder %s43, %s44
      %p58 = scmp.eq.s32.totalorder %s22, 1
      %p59 = por %p57, %p58
      %p61 = scmp.ne.s32.totalorder %s44, %s60
      %p62 = scmp.eq.s32.totalorder %s22, 0
      %p63 = por %p61, %p62
      %s64 = ssub.s32 %s23, %s35
      %s65 = ssub.s32 %s24, %s31
      %s66 = sor.u32 %s64, %s65
      %p67 = scmp.eq.s32.totalorder %s66, 0
      %s69 = sadd.s32 %s68, 1
      %s70 = scalar_select %p67, %s68, %s69
      %p73 = pneg %p67
      %p74 = scmp.eq.s32.totalorder %s16, 1
      %p75 = por %p73, %p74
      %p76 = scmp.ne.s32.totalorder %s68, %s71
      %p77 = scmp.eq.s32.totalorder %s16, 0
      %p78 = por %p76, %p77
      %p79 = scmp.ne.s32.totalorder %s68, %s71
      %p80 = scmp.eq.s32.totalorder %s21, 1
      %p81 = por %p79, %p80
      %p82 = scmp.ne.s32.totalorder %s71, %s72
      %p83 = scmp.eq.s32.totalorder %s21, 0
      %p84 = por %p82, %p83
      %p85 = scmp.ne.s32.totalorder %s71, %s72
      %p86 = scmp.eq.s32.totalorder %s22, 1
      %p87 = por %p85, %p86
      %p89 = scmp.ne.s32.totalorder %s72, %s88
      %p90 = scmp.eq.s32.totalorder %s22, 0
      %p91 = por %p89, %p90
      %s92 = ssub.s32 %s23, %s35
      %s93 = ssub.s32 %s24, %s31
      %s94 = sor.u32 %s92, %s93
      %p95 = scmp.eq.s32.totalorder %s94, 0
      %s97 = sadd.s32 %s96, 1
      %s98 = scalar_select %p95, %s96, %s97
      %p101 = pneg %p95
      %p102 = scmp.eq.s32.totalorder %s16, 1
      %p103 = por %p101, %p102
      %p104 = scmp.ne.s32.totalorder %s96, %s99
      %p105 = scmp.eq.s32.totalorder %s16, 0
      %p106 = por %p104, %p105
      %p107 = scmp.ne.s32.totalorder %s96, %s99
      %p108 = scmp.eq.s32.totalorder %s21, 1
      %p109 = por %p107, %p108
      %p110 = scmp.ne.s32.totalorder %s99, %s100
      %p111 = scmp.eq.s32.totalorder %s21, 0
      %p112 = por %p110, %p111
      %p113 = scmp.ne.s32.totalorder %s99, %s100
      %p114 = scmp.eq.s32.totalorder %s22, 1
      %p115 = por %p113, %p114
      %p117 = scmp.ne.s32.totalorder %s100, %s116
      %p118 = scmp.eq.s32.totalorder %s22, 0
      %p119 = por %p117, %p118
      %s120 = ssub.s32 %s23, %s35
      %s121 = ssub.s32 %s24, %s31
      %s122 = sor.u32 %s120, %s121
      %p123 = scmp.eq.s32.totalorder %s122, 0
      %s125 = sadd.s32 %s124, 1
      %s126 = scalar_select %p123, %s124, %s125
      %p129 = pneg %p123
      %p130 = scmp.eq.s32.totalorder %s16, 1
      %p131 = por %p129, %p130
      %p132 = scmp.ne.s32.totalorder %s124, %s127
      %p133 = scmp.eq.s32.totalorder %s16, 0
      %p134 = por %p132, %p133
      %p135 = scmp.ne.s32.totalorder %s124, %s127
      %p136 = scmp.eq.s32.totalorder %s21, 1
      %p137 = por %p135, %p136
      %p138 = scmp.ne.s32.totalorder %s127, %s128
      %p139 = scmp.eq.s32.totalorder %s21, 0
      %p140 = por %p138, %p139
      %p141 = scmp.ne.s32.totalorder %s127, %s128
      %p142 = scmp.eq.s32.totalorder %s22, 1
      %p143 = por %p141, %p142
      %p145 = scmp.ne.s32.totalorder %s128, %s144
      %p146 = scmp.eq.s32.totalorder %s22, 0
      %p147 = por %p145, %p146
      %p148 = scmp.le.s32.totalorder 1, %s16
      %p149 = scmp.lt.s32.totalorder %s16, 3
      %p150 = pnand %p148, %p149
      %p151 = pneg %p150
      // Predicated region
      $region9: #{tpu_custom_call.1} parent=5 // pred_check
        _
      $region10: #{tpu_custom_call.1} parent=5 // pred_check_branch
        %153 = sbr.rel (%p150) target = $region12
      $region11: #{tpu_custom_call.1} parent=5 // pred_region
        %s154 = ssub.s32 %s16, 1
      $region12: #{tpu_custom_call.1} parent=5 // pred_fallthru
        _
      %p155 = scmp.lt.s32.totalorder %s16, 2
      // Predicated region
      $region13: #{tpu_custom_call.1} parent=5 // pred_check
        %p156 = pneg %p155
      $region14: #{tpu_custom_call.1} parent=5 // pred_check_branch
        %158 = sbr.rel (%p156) target = $region16
      $region15: #{tpu_custom_call.1} parent=5 // pred_region
        // Predicated region
        $region17: #{tpu_custom_call.1} parent=15 // pred_check
          %p159 = pneg %p50
        $region18: #{tpu_custom_call.1} parent=15 // pred_check_branch
          %161 = sbr.rel (%p159) target = $region20
        $region19: #{tpu_custom_call.1} parent=15 // pred_region
          %p162 = scmp.lt.s32.totalorder %s23, 1
          %s163 = scalar_select %p162, %s23, 1
          %p164 = scmp.lt.s32.totalorder %s24, 0
          %s165 = scalar_select %p164, %s24, 0
          %s166 = sadd.s32 %s165, %s163
          %s167 = smul.addr %s166, 8
          %s168 = scalar_lea.vmem %s0, %s167
        $region20: #{tpu_custom_call.1} parent=15 // pred_fallthru
          _
        // Predicated region
        $region21: #{tpu_custom_call.1} parent=15 // pred_check
          %p169 = pneg %p78
        $region22: #{tpu_custom_call.1} parent=15 // pred_check_branch
          %171 = sbr.rel (%p169) target = $region24
        $region23: #{tpu_custom_call.1} parent=15 // pred_region
          %p172 = scmp.lt.s32.totalorder %s23, 1
          %s173 = scalar_select %p172, %s23, 1
          %p174 = scmp.lt.s32.totalorder %s24, 0
          %s175 = scalar_select %p174, %s24, 0
          %s176 = sadd.s32 %s175, %s173
          %s177 = smul.addr %s176, 8
          %s178 = scalar_lea.vmem %s1, %s177
        $region24: #{tpu_custom_call.1} parent=15 // pred_fallthru
          _
      $region16: #{tpu_custom_call.1} parent=5 // pred_fallthru
        _
      %p179 = scmp.le.s32.totalorder 1, %s16
      %p180 = scmp.lt.s32.totalorder %s16, 3
      %p181 = pnand %p179, %p180
      %p182 = pneg %p181
      // Predicated region
      $region25: #{tpu_custom_call.1} parent=5 // pred_check
        _
      $region26: #{tpu_custom_call.1} parent=5 // pred_check_branch
        %184 = sbr.rel (%p181) target = $region28
      $region27: #{tpu_custom_call.1} parent=5 // pred_region
        %s185 = ssub.s32 %s16, 1
        %p186 = scmp.lt.s32.totalorder %s25, 1
        %s187 = scalar_select %p186, %s25, 1
        %p188 = scmp.lt.s32.totalorder %s26, 0
        %s189 = scalar_select %p188, %s26, 0
        %s190 = sadd.s32 %s189, %s187
        %s191 = smul.addr %s190, 8
        %s192 = scalar_lea.vmem %s0, %s191
        %p193 = pneg %p56
        %p194 = pneg %p53
        %p195 = scmp.lt.s32.totalorder %s25, 1
        %s196 = scalar_select %p195, %s25, 1
        %p197 = scmp.lt.s32.totalorder %s26, 0
        %s198 = scalar_select %p197, %s26, 0
        %s199 = sadd.s32 %s198, %s196
        %s200 = smul.addr %s199, 8
        %s201 = scalar_lea.vmem %s1, %s200
        %p202 = pneg %p84
        %p203 = pneg %p81
        %p204 = pneg %p112
        %p205 = pneg %p109
        %s206 = sand.u32 %s99, 1
        %s207 = scalar_lea.sflag [#allocation3], %s206
        %s208 = sand.u32 %s99, 1
        %s209 = scalar_lea.vmem [#allocation2], %s208
        %p210 = pneg %p140
        %p211 = pneg %p137
        %s212 = sand.u32 %s127, 1
        %s213 = scalar_lea.sflag [#allocation5], %s212
        %s214 = sand.u32 %s127, 1
        %s215 = scalar_lea.vmem [#allocation4], %s214
        %p216 = scmp.lt.s32.totalorder %s25, 1
        %s217 = scalar_select %p216, %s25, 1
        %p218 = scmp.lt.s32.totalorder %s26, 0
        %s219 = scalar_select %p218, %s26, 0
        %s220 = sadd.s32 %s219, %s217
        %s221 = smul.addr %s220, 8
        %s222 = scalar_lea.vmem %s0, %s221
        %p223 = scmp.lt.s32.totalorder %s25, 1
        %s224 = scalar_select %p223, %s25, 1
        %p225 = scmp.lt.s32.totalorder %s26, 0
        %s226 = scalar_select %p225, %s26, 0
        %s227 = sadd.s32 %s226, %s224
        %s228 = smul.addr %s227, 8
        %s229 = scalar_lea.vmem %s1, %s228
        %v230 = vld [vmem:[%s229] sm:$0xff]
        %v231 = vld [vmem:[%s222] sm:$0xff]
        %vm232 = vcmask 261120
        %v233 = vsel %vm232, %v230, -inf
        %234 = vmax.xlane.f32.xlu0 %v233
        %v235 = vpop.xlane.xlu0 %234
        %v236 = vsub.f32 %v230, %v235
        %v237 = vmul.f32 %v236, 1.442695
        %v238 = vpow.pop %v237
        %v239 = vsel %vm232, %v238, 0.0
        %240 = vadd.xlane.f32.xlu0 %v239
        %v241 = vpop.xlane.xlu0 %240
        %v242 = vlog2.pop %v241
        %v243 = vmul.f32 %v242, 0.6931472
        %v244 = vadd.f32 %v235, %v243
        %v245 = vlaneseq
        %v246 = vand.u32 %v245, 127
        %247 = vset.pattern.permute.xlu0 0
        %248 = vperm.xlu0 %247, %v231
        %v249 = vpop.permute.xlu0 %248
        %vm250 = vcmp.eq.s32.totalorder %v246, %v249
        %v251 = vsel %vm250, 0.903125, 0.003125
        %v252 = vmul.f32 %v230, %v251
        %v253 = vsel %vm232, %v252, 0.0
        %254 = vadd.xlane.f32.xlu0 %v253
        %v255 = vpop.xlane.xlu0 %254
        %v256 = vsub.f32 %v244, %v255
        %v257 = vlaneseq
        %v258 = vshrl.u32 %v257, 7
        %s259 = smul.u32 %s26, 8
        %v260 = vstv %s259
        %v261 = vadd.s32 %v260, %v258
        %vm262 = vcmp.lt.s32.totalorder %v261, 8
        %vm263 = vcmp.ne.s32.totalorder %v231, 4294967196
        %vm264 = vmand %vm262, %vm263
        %v265 = vsel %vm264, 1.0, 0.0
        %v266 = vsel %vm264, %v256, 0.0
        %vm267 = vcmask 7168
        %v268 = vsel %vm267, %v266, 0.0
        %v269 = vrot.slane %v268, 4
        %v270 = vadd.f32 %v268, %v269
        %v271 = vrot.slane %v270, 2
        %v272 = vadd.f32 %v270, %v271
        %v273 = vrot.slane %v272, 1
        %v274 = vadd.f32 %v272, %v273
        %v275 = vsel %vm267, %v265, 0.0
        %v276 = vrot.slane %v275, 4
        %v277 = vadd.f32 %v275, %v276
        %v278 = vrot.slane %v277, 2
        %v279 = vadd.f32 %v277, %v278
        %v280 = vrot.slane %v279, 1
        %v281 = vadd.f32 %v279, %v280
        %283 = vset.pattern.permute.xlu0 0
        %284 = vperm.xlu0 %283, %v274
        %v285 = vpop.permute.xlu0 %284
        %287 = vst [vmem:[%s209] sm:$0x1] %v285
        %289 = vset.pattern.permute.xlu0 0
        %290 = vperm.xlu0 %289, %v281
        %v291 = vpop.permute.xlu0 %290
        %293 = vst [vmem:[%s215] sm:$0x1] %v291
        %s294 = sand.u32 %s99, 1
        %s295 = scalar_lea.sflag [#allocation3], %s294
        %s296 = sand.u32 %s99, 1
        %s297 = scalar_lea.vmem [#allocation2], %s296
        %s298 = sand.u32 %s127, 1
        %s299 = scalar_lea.sflag [#allocation5], %s298
        %s300 = sand.u32 %s127, 1
        %s301 = scalar_lea.vmem [#allocation4], %s300
        // Predicated region
        $region29: #{tpu_custom_call.1} parent=27 // pred_check
          %p302 = pneg %p109
        $region30: #{tpu_custom_call.1} parent=27 // pred_check_branch
          %304 = sbr.rel (%p302) target = $region32
        $region31: #{tpu_custom_call.1} parent=27 // pred_region
          %306 = vsyncadd %s295, 0
          %s307 = sadd.s32 %s26, %s25
          %s308 = scalar_lea.hbm %s2, %s307
          %s310 = sshll.u32 %s297, 4
          %s311 = int_to_ptr.vmem [resolvable:$true] %s310
          %s312 = sshll.u32 %s308, 4
          %s313 = int_to_ptr.hbm [resolvable:$true] %s312
          %315 = dma.vmem_to_hbm [thread:$0]  %s311, 16, %s313, %s295
        $region32: #{tpu_custom_call.1} parent=27 // pred_fallthru
          _
        // Predicated region
        $region33: #{tpu_custom_call.1} parent=27 // pred_check
          %p316 = pneg %p137
        $region34: #{tpu_custom_call.1} parent=27 // pred_check_branch
          %318 = sbr.rel (%p316) target = $region36
        $region35: #{tpu_custom_call.1} parent=27 // pred_region
          %320 = vsyncadd %s299, 0
          %s321 = sadd.s32 %s26, %s25
          %s322 = scalar_lea.hbm %s3, %s321
          %s324 = sshll.u32 %s301, 4
          %s325 = int_to_ptr.vmem [resolvable:$true] %s324
          %s326 = sshll.u32 %s322, 4
          %s327 = int_to_ptr.hbm [resolvable:$true] %s326
          %329 = dma.vmem_to_hbm [thread:$0]  %s325, 16, %s327, %s299
        $region36: #{tpu_custom_call.1} parent=27 // pred_fallthru
          _
      $region28: #{tpu_custom_call.1} parent=5 // pred_fallthru
        _
      %p330 = scmp.le.s32.totalorder 2, %s16
      // Predicated region
      $region37: #{tpu_custom_call.1} parent=5 // pred_check
        %p331 = pneg %p330
      $region38: #{tpu_custom_call.1} parent=5 // pred_check_branch
        %333 = sbr.rel (%p331) target = $region40
      $region39: #{tpu_custom_call.1} parent=5 // pred_region
        %s334 = ssub.s32 %s16, 2
        // Predicated region
        $region41: #{tpu_custom_call.1} parent=39 // pred_check
          %p335 = pneg %p115
        $region42: #{tpu_custom_call.1} parent=39 // pred_check_branch
          %337 = sbr.rel (%p335) target = $region44
        $region43: #{tpu_custom_call.1} parent=39 // pred_region
          %s338 = sand.u32 %s100, 1
          %s339 = scalar_lea.sflag [#allocation3], %s338
          %s340 = sand.u32 %s100, 1
          %s341 = scalar_lea.vmem [#allocation2], %s340
          %343 = dma.done %s339, 16
        $region44: #{tpu_custom_call.1} parent=39 // pred_fallthru
          _
        // Predicated region
        $region45: #{tpu_custom_call.1} parent=39 // pred_check
          %p344 = pneg %p143
        $region46: #{tpu_custom_call.1} parent=39 // pred_check_branch
          %346 = sbr.rel (%p344) target = $region48
        $region47: #{tpu_custom_call.1} parent=39 // pred_region
          %s347 = sand.u32 %s128, 1
          %s348 = scalar_lea.sflag [#allocation5], %s347
          %s349 = sand.u32 %s128, 1
          %s350 = scalar_lea.vmem [#allocation4], %s349
          %352 = dma.done %s348, 16
        $region48: #{tpu_custom_call.1} parent=39 // pred_fallthru
          _
      $region40: #{tpu_custom_call.1} parent=5 // pred_fallthru
        _
    $region6: #{tpu_custom_call.1} parent=1 // loop_footer
      %s20 = sadd.s32 1, %s16
    $region7: #{tpu_custom_call.1} parent=1 // loop_footer_branch
      %15 = sbr.rel target = $region3
    $region8: #{tpu_custom_call.1} parent=1 // loop_exit
      _
    %353 = vsyncpa [#allocation3], 1
    %s354 = scalar_lea.sflag [#allocation3], 1
    %355 = vsyncpa %s354, 1
    %356 = vsyncpa [#allocation5], 1
    %s357 = scalar_lea.sflag [#allocation5], 1
    %358 = vsyncpa %s357, 1

</llo_original>
